<compile_context>
chip_gen: v5e
topology: v5e:2x2
jax: 0.10.0
libtpu: 0.0.40
codegen_flags: <defaults>
</compile_context>

<pallas_src>
import jax
import jax.numpy as jnp
from jax.experimental import pallas as pl
from jax.experimental.pallas import tpu as pltpu


# ----------------------------------------------------------------------------
# Kernel 1: batched input projection (all timesteps, both directions at once)
# ----------------------------------------------------------------------------
def _proj_kernel(*refs):
    """refs = (x_1..x_n, w_1..w_n, bias, out).

    x_i: (R, D_i) row-tile of the flattened (T*B, D_i) input part
    w_i: (D_i, 8H) input->gates weights for fwd|bwd fused along the last dim
    bias: (1, 8H) combined b_ih + b_hh for both directions
    out:  (R, 8H)
    """
    n = (len(refs) - 2) // 2
    x_refs = refs[:n]
    w_refs = refs[n:2 * n]
    b_ref = refs[-2]
    o_ref = refs[-1]

    acc = jnp.dot(x_refs[0][...], w_refs[0][...],
                  preferred_element_type=jnp.float32)
    for xr, wr in zip(x_refs[1:], w_refs[1:]):
        acc = acc + jnp.dot(xr[...], wr[...],
                            preferred_element_type=jnp.float32)
    o_ref[...] = (acc + b_ref[...]).astype(o_ref.dtype)


def _row_tile(rows, cap=512):
    if rows <= cap:
        return rows
    for k in (512, 256, 128, 64, 32, 16, 8):
        if rows % k == 0:
            return k
    return rows


def _input_projection(parts, w_parts, bias8):
    """parts: list of (T, B, D_i); w_parts: list of (D_i, 8H); bias8: (1, 8H).

    Returns gx: (T, B, 8H) = sum_i parts_i @ w_parts_i + bias8.
    """
    T, B = parts[0].shape[:2]
    G = w_parts[0].shape[1]
    rows = T * B
    flat = [p.reshape(rows, p.shape[-1]) for p in parts]
    rt = _row_tile(rows)

    in_specs = (
        [pl.BlockSpec((rt, f.shape[1]), lambda r: (r, 0)) for f in flat]
        + [pl.BlockSpec(w.shape, lambda r: (0, 0)) for w in w_parts]
        + [pl.BlockSpec((1, G), lambda r: (0, 0))]
    )

    out = pl.pallas_call(
        _proj_kernel,
        out_shape=jax.ShapeDtypeStruct((rows, G), jnp.float32),
        grid=(rows // rt,),
        in_specs=in_specs,
        out_specs=pl.BlockSpec((rt, G), lambda r: (r, 0)),
        compiler_params=pltpu.CompilerParams(
            dimension_semantics=("parallel",)),
    )(*flat, *w_parts, bias8)
    return out.reshape(T, B, G)


# ----------------------------------------------------------------------------
# Kernel 2: fused bidirectional recurrence (chunked over time)
# ----------------------------------------------------------------------------
def _bilstm_chunk_kernel(gx_ref, whh_ref, out_ref, h_scr, c_scr):
    """One time-chunk of one direction.

    gx_ref:  (Tc, B, 4H)  precomputed x-projection (+bias) for this direction
    whh_ref: (H, 4H)      hidden->gates weights for this direction
    out_ref: (Tc, B, H)   hidden states, written in natural time order
    h_scr, c_scr: (B, H)  f32 VMEM scratch carrying state across chunks
    """
    d = pl.program_id(0)          # 0 = forward, 1 = backward

    @pl.when(pl.program_id(1) == 0)
    def _():
        h_scr[...] = jnp.zeros_like(h_scr)
        c_scr[...] = jnp.zeros_like(c_scr)

    Tc = gx_ref.shape[0]
    H = h_scr.shape[-1]
    whh = whh_ref[...]            # hoisted; constant across the chunk

    def step(i, carry):
        h, c = carry
        # forward walks local indices 0..Tc-1; backward walks Tc-1..0
        t = (1 - d) * i + d * (Tc - 1 - i)
        gates = gx_ref[t] + jnp.dot(h, whh,
                                    preferred_element_type=jnp.float32)
        # PyTorch gate order [i, f, g, o].  With production H (multiple of
        # 128) these slices are lane-aligned; at tiny demo H they are not,
        # which is acceptable for the serial (B,4H) tile.
        i_g = jax.nn.sigmoid(gates[:, 0 * H:1 * H])
        f_g = jax.nn.sigmoid(gates[:, 1 * H:2 * H])
        g_g = jnp.tanh(gates[:, 2 * H:3 * H])
        o_g = jax.nn.sigmoid(gates[:, 3 * H:4 * H])
        c_new = f_g * c + i_g * g_g
        h_new = o_g * jnp.tanh(c_new)
        out_ref[t] = h_new.astype(out_ref.dtype)
        return h_new, c_new

    h, c = jax.lax.fori_loop(0, Tc, step, (h_scr[...], c_scr[...]),
                             unroll=True)
    h_scr[...] = h
    c_scr[...] = c


def _bilstm_recurrence(gx, whh_stacked, hidden_size, chunk):
    """gx: (T, B, 8H) fused fwd|bwd x-projection; whh_stacked: (2, H, 4H).

    Returns (2, T, B, H): [0] forward hidden states, [1] backward hidden
    states, both in natural time order.
    """
    T, B, _ = gx.shape
    H = hidden_size
    nc = T // chunk

    def gx_idx(d, s):
        # forward reads chunk s of the fwd half; backward reads chunk nc-1-s
        # of the bwd half (sequence reversal via index_map, no HBM copies).
        return ((1 - d) * s + d * (nc - 1 - s), 0, d)

    def out_idx(d, s):
        return (d, (1 - d) * s + d * (nc - 1 - s), 0, 0)

    return pl.pallas_call(
        _bilstm_chunk_kernel,
        out_shape=jax.ShapeDtypeStruct((2, T, B, H), jnp.float32),
        grid=(2, nc),
        in_specs=[
            pl.BlockSpec((chunk, B, 4 * H), gx_idx),
            pl.BlockSpec((None, H, 4 * H), lambda d, s: (d, 0, 0)),
        ],
        out_specs=pl.BlockSpec((None, chunk, B, H), out_idx),
        scratch_shapes=[
            pltpu.VMEM((B, H), jnp.float32),
            pltpu.VMEM((B, H), jnp.float32),
        ],
        compiler_params=pltpu.CompilerParams(
            # direction axis parallel (both v7x TensorCores); time axis must
            # stay "arbitrary" — the h/c scratch carry is a true recurrence.
            dimension_semantics=("parallel", "arbitrary")),
    )(gx, whh_stacked)


# ----------------------------------------------------------------------------
# Parameters (PyTorch nn.LSTM layout) and packing for the kernels
# ----------------------------------------------------------------------------
def init_lstm_params(key, input_size, hidden_size, num_layers):
    """Per layer, per direction: (W_ih (4H,in), W_hh (4H,H), b_ih (4H), b_hh (4H))."""
    H = hidden_size
    bound = 1.0 / float(hidden_size) ** 0.5
    params = []
    for layer in range(num_layers):
        in_dim = input_size if layer == 0 else 2 * hidden_size
        dirs = []
        for _ in range(2):  # forward, backward
            key, k1, k2, k3, k4 = jax.random.split(key, 5)
            dirs.append((
                jax.random.uniform(k1, (4 * H, in_dim), jnp.float32, -bound, bound),
                jax.random.uniform(k2, (4 * H, H), jnp.float32, -bound, bound),
                jax.random.uniform(k3, (4 * H,), jnp.float32, -bound, bound),
                jax.random.uniform(k4, (4 * H,), jnp.float32, -bound, bound),
            ))
        params.append(tuple(dirs))
    return params


def _pack_params(params, hidden_size):
    H = hidden_size
    packed = []
    for (fwd, bwd) in params:
        w_ih_f, w_hh_f, b_ih_f, b_hh_f = fwd
        w_ih_b, w_hh_b, b_ih_b, b_hh_b = bwd
        wx = jnp.concatenate([w_ih_f.T, w_ih_b.T], axis=1)          # (in, 8H)
        bias8 = jnp.concatenate([b_ih_f + b_hh_f,
                                 b_ih_b + b_hh_b]).reshape(1, 8 * H)
        whh = jnp.stack([w_hh_f.T, w_hh_b.T], axis=0)               # (2, H, 4H)
        packed.append((wx, bias8, whh))
    return packed


def _default_chunk(T, cap=16):
    c = 1
    for k in range(1, min(T, cap) + 1):
        if T % k == 0:
            c = k
    return c


# ----------------------------------------------------------------------------
# Public forward: equivalent of LSTM_block.forward (eval semantics)
# ----------------------------------------------------------------------------
def lstm_block_forward(x_btd, params, hidden_size, num_layers, chunk=None):
    """x (B, T, D) -> output (B, T, 2H), PyTorch batch_first bidirectional."""
    H = hidden_size
    packed = _pack_params(params, H)
    x = jnp.transpose(x_btd, (1, 0, 2))            # time-major (T, B, D)
    T = x.shape[0]
    Tc = chunk if chunk is not None else _default_chunk(T)

    parts = [x]                                    # layer input as list of parts
    for layer in range(num_layers):
        wx, bias8, whh = packed[layer]
        # Split W_ih rows per input part: the next layer consumes the fwd/bwd
        # halves directly — no (T,B,2H) concat materialized between layers.
        w_parts, off = [], 0
        for p in parts:
            d = p.shape[-1]
            w_parts.append(wx[off:off + d])
            off += d
        gx = _input_projection(parts, w_parts, bias8)        # (T, B, 8H)
        out = _bilstm_recurrence(gx, whh, H, Tc)             # (2, T, B, H)
        parts = [out[0], out[1]]

    y = jnp.concatenate(parts, axis=-1)                      # (T, B, 2H)
    return jnp.transpose(y, (1, 0, 2))                       # (B, T, 2H)


# ----------------------------------------------------------------------------
# Pure-JAX reference (sanity check only)
# ----------------------------------------------------------------------------
def _ref_single_direction(x_tbd, w_ih, w_hh, b_ih, b_hh, H):
    B = x_tbd.shape[1]

    def step(carry, x_t):
        h, c = carry
        gates = x_t @ w_ih.T + b_ih + h @ w_hh.T + b_hh
        i = jax.nn.sigmoid(gates[:, 0 * H:1 * H])
        f = jax.nn.sigmoid(gates[:, 1 * H:2 * H])
        g = jnp.tanh(gates[:, 2 * H:3 * H])
        o = jax.nn.sigmoid(gates[:, 3 * H:4 * H])
        c = f * c + i * g
        h = o * jnp.tanh(c)
        return (h, c), h

    init = (jnp.zeros((B, H), jnp.float32), jnp.zeros((B, H), jnp.float32))
    _, hs = jax.lax.scan(step, init, x_tbd)
    return hs


def _ref_forward(x_btd, params, H, num_layers):
    h = jnp.transpose(x_btd, (1, 0, 2))
    for layer in range(num_layers):
        fwd, bwd = params[layer]
        of = _ref_single_direction(h, *fwd, H)
        ob = _ref_single_direction(h[::-1], *bwd, H)[::-1]
        h = jnp.concatenate([of, ob], axis=-1)
    return jnp.transpose(h, (1, 0, 2))


if __name__ == "__main__":
    batch, seq, input_size = 2, 8, 16
    hidden_size, num_layers = 32, 2

    key = jax.random.PRNGKey(0)
    k_x, k_p = jax.random.split(key)
    x = jax.random.normal(k_x, (batch, seq, input_size), dtype=jnp.float32)
    params = init_lstm_params(k_p, input_size, hidden_size, num_layers)

    ref = jax.block_until_ready(_ref_forward(x, params, hidden_size, num_layers))

    # chunk=4 -> 2 time-chunks per direction: exercises the cross-chunk h/c
    # carry and the reversed-chunk index_map of the backward direction.
    out = jax.block_until_ready(
        lstm_block_forward(x, params, hidden_size, num_layers, chunk=4))
    assert out.shape == (batch, seq, 2 * hidden_size), out.shape
    assert jnp.allclose(out, ref, atol=1e-4, rtol=1e-4), \
        float(jnp.max(jnp.abs(out - ref)))

    # default chunking (whole sequence in a single chunk at these shapes)
    out2 = jax.block_until_ready(
        lstm_block_forward(x, params, hidden_size, num_layers))
    assert jnp.allclose(out2, ref, atol=1e-4, rtol=1e-4)

    print("KERNEL_OK")
</pallas_src>

<mosaic_0001>
module attributes {stable_mosaic.version = 11 : i64} {
  func.func @_proj_kernel(%arg0: i32, %arg1: memref<16x16xf32, #tpu.memory_space<vmem>>, %arg2: memref<16x256xf32, #tpu.memory_space<vmem>>, %arg3: memref<1x256xf32, #tpu.memory_space<vmem>>, %arg4: memref<16x256xf32, #tpu.memory_space<vmem>>) attributes {dimension_semantics = [#tpu.dimension_semantics<parallel>], iteration_bounds = array<i64: 1>, scalar_prefetch = 0 : i64, scratch_operands = 0 : i64, tpu.core_type = #tpu.core_type<tc>, window_params = [{transform_indices = @transform_0, window_bounds = array<i64: 16, 16>}, {pipeline_mode = #tpu.pipeline_mode<synchronous>, transform_indices = @transform_1, window_bounds = array<i64: 16, 256>}, {pipeline_mode = #tpu.pipeline_mode<synchronous>, transform_indices = @transform_2, window_bounds = array<i64: 1, 256>}, {transform_indices = @transform_3, window_bounds = array<i64: 16, 256>}]} {
    %c0 = arith.constant 0 : index
    %c0_0 = arith.constant 0 : index
    %0 = vector.load %arg1[%c0, %c0_0] : memref<16x16xf32, #tpu.memory_space<vmem>>, vector<16x16xf32>
    %c0_1 = arith.constant 0 : index
    %c0_2 = arith.constant 0 : index
    %1 = vector.load %arg2[%c0_1, %c0_2] : memref<16x256xf32, #tpu.memory_space<vmem>>, vector<16x256xf32>
    %cst = arith.constant dense<0.000000e+00> : vector<16x256xf32>
    %2 = tpu.matmul %0, %1, %cst {dimension_numbers = #tpu.dot_dimension_numbers<[1], [0], [0], [1], [0, 0, 1, 1], [], []>} : vector<16x16xf32>, vector<16x256xf32>, vector<16x256xf32> -> vector<16x256xf32>
    %c0_3 = arith.constant 0 : index
    %c0_4 = arith.constant 0 : index
    %3 = vector.load %arg3[%c0_3, %c0_4] : memref<1x256xf32, #tpu.memory_space<vmem>>, vector<1x256xf32>
    %4 = vector.broadcast %3 : vector<1x256xf32> to vector<16x256xf32>
    %5 = arith.addf %2, %4 : vector<16x256xf32>
    %c0_5 = arith.constant 0 : index
    %c0_6 = arith.constant 0 : index
    %6 = vector.load %arg4[%c0_5, %c0_6] : memref<16x256xf32, #tpu.memory_space<vmem>>, vector<16x256xf32>
    tpu.vector_store %arg4[%c0_5, %c0_6], %5 {strides = array<i32>} : memref<16x256xf32, #tpu.memory_space<vmem>>, vector<16x256xf32>,
    return
  }
  func.func @transform_0(%arg0: i32) -> (i32, i32) {
    %c0_i32 = arith.constant 0 : i32
    %c0_i32_0 = arith.constant 0 : i32
    return %arg0, %c0_i32 : i32, i32
  }
  func.func @transform_1(%arg0: i32) -> (i32, i32) {
    %c0_i32 = arith.constant 0 : i32
    %c0_i32_0 = arith.constant 0 : i32
    %c0_i32_1 = arith.constant 0 : i32
    return %c0_i32, %c0_i32_0 : i32, i32
  }
  func.func @transform_2(%arg0: i32) -> (i32, i32) {
    %c0_i32 = arith.constant 0 : i32
    %c0_i32_0 = arith.constant 0 : i32
    %c0_i32_1 = arith.constant 0 : i32
    return %c0_i32, %c0_i32_0 : i32, i32
  }
  func.func @transform_3(%arg0: i32) -> (i32, i32) {
    %c0_i32 = arith.constant 0 : i32
    %c0_i32_0 = arith.constant 0 : i32
    return %arg0, %c0_i32 : i32, i32
  }
}

</mosaic_0001>

<llo_original>
// kernel: tpu_custom_call.1
$region0: #{tpu_custom_call.1}
  #allocation0 [shape = 'u32[]', space=smem, size = 0x4, offset = 0x4, fixed_abs, tag = 'smem constant byte address 0x4 - core index']
  #allocation1 [shape = 'u32[72,128]{1,0:T(1,128)}', space=vmem, size = 0x9000, scoped, tag = 'internal scratch']
  %s0 = inlined_call_operand.hbm [shape: f32[16,16], index: 0, kind: input, shape index: {}]
  %s1 = inlined_call_operand.hbm [shape: f32[16,256], index: 1, kind: input, shape index: {}]
  %s2 = inlined_call_operand.hbm [shape: f32[1,256], index: 2, kind: input, shape index: {}]
  %s3 = inlined_call_operand.hbm [shape: f32[16,256], index: 3, kind: output, shape index: {}]
  %s4 = sld [smem:[#allocation0]]
  $region34: #{tpu_custom_call.1} parent=0
    _
  %s6 = ssub.s32 1, %s4
  %s7 = scalar_select 0, %s6, %s4
  $region1: #{tpu_custom_call.1} parent=0
    #allocation2 [shape = 'u8[8192]{0}', space=vmem, size = 0x2000, scoped, tag = 'input window, operand 0, single buffered']
    #allocation3 [shape = 's32[1]{0}', space=sflag, size = 0x4, scoped, tag = 'scoped memory for tpu_custom_call.1']
    #allocation4 [shape = 's32[1]{0}', space=sflag, size = 0x4, scoped, tag = 'scoped memory for tpu_custom_call.1']
    #allocation5 [shape = 'u8[16384]{0}', space=vmem, size = 0x4000, scoped, tag = 'input window, operand 1, single buffered']
    #allocation6 [shape = 's32[1]{0}', space=sflag, size = 0x4, scoped, tag = 'scoped memory for tpu_custom_call.1']
    #allocation7 [shape = 'u8[1024]{0}', space=vmem, size = 0x400, scoped, tag = 'input window, operand 2, single buffered']
    #allocation8 [shape = 'u8[16384]{0}', space=vmem, size = 0x4000, scoped, tag = 'output window, operand 0, single buffered']
    %8 = vsyncpa [#allocation3], 0
    %9 = vsyncpa [#allocation6], 0
    %10 = vsyncpa [#allocation4], 0
    // Predicated region
    $region2: #{tpu_custom_call.1} parent=1 // pred_check
      _
    $region3: #{tpu_custom_call.1} parent=1 // pred_check_branch
      %12 = sbr.rel (0) target = $region5
    $region4: #{tpu_custom_call.1} parent=1 // pred_region
      %14 = vsyncadd [#allocation3], 0
      %s15 = sshll.u32 %s0, 4
      %s16 = int_to_ptr.hbm [resolvable:$true] %s15
      %s17 = sshll.u32 [#allocation2], 4
      %s18 = int_to_ptr.vmem [resolvable:$true] %s17
      %23 = dma.hbm_to_vmem [thread:$0]  %s16, 256, %s18, [#allocation3], 128, 128, 8
    $region5: #{tpu_custom_call.1} parent=1 // pred_fallthru
      _
    // Predicated region
    $region6: #{tpu_custom_call.1} parent=1 // pred_check
      _
    $region7: #{tpu_custom_call.1} parent=1 // pred_check_branch
      %25 = sbr.rel (0) target = $region9
    $region8: #{tpu_custom_call.1} parent=1 // pred_region
      %27 = vsyncadd [#allocation6], 0
      %s28 = sshll.u32 %s1, 4
      %s29 = int_to_ptr.hbm [resolvable:$true] %s28
      %s30 = sshll.u32 [#allocation5], 4
      %s31 = int_to_ptr.vmem [resolvable:$true] %s30
      %36 = dma.hbm_to_vmem [thread:$0]  %s29, 512, %s31, [#allocation6], 256, 256, 16
    $region9: #{tpu_custom_call.1} parent=1 // pred_fallthru
      _
    // Predicated region
    $region10: #{tpu_custom_call.1} parent=1 // pred_check
      _
    $region11: #{tpu_custom_call.1} parent=1 // pred_check_branch
      %38 = sbr.rel (0) target = $region13
    $region12: #{tpu_custom_call.1} parent=1 // pred_region
      %40 = vsyncadd [#allocation6], 0
      %s42 = sshll.u32 %s2, 4
      %s43 = int_to_ptr.hbm [resolvable:$true] %s42
      %s44 = sshll.u32 [#allocation7], 4
      %s45 = int_to_ptr.vmem [resolvable:$true] %s44
      %47 = dma.hbm_to_vmem [thread:$0]  %s43, 32, %s45, [#allocation6]
    $region13: #{tpu_custom_call.1} parent=1 // pred_fallthru
      _
    // Predicated region
    $region14: #{tpu_custom_call.1} parent=1 // pred_check
      _
    $region15: #{tpu_custom_call.1} parent=1 // pred_check_branch
      %49 = sbr.rel (0) target = $region17
    $region16: #{tpu_custom_call.1} parent=1 // pred_region
      %51 = dma.done [#allocation3], 256
    $region17: #{tpu_custom_call.1} parent=1 // pred_fallthru
      _
    // Predicated region
    $region18: #{tpu_custom_call.1} parent=1 // pred_check
      _
    $region19: #{tpu_custom_call.1} parent=1 // pred_check_branch
      %53 = sbr.rel (0) target = $region21
    $region20: #{tpu_custom_call.1} parent=1 // pred_region
      %55 = dma.done [#allocation6], 512
    $region21: #{tpu_custom_call.1} parent=1 // pred_fallthru
      _
    // Predicated region
    $region22: #{tpu_custom_call.1} parent=1 // pred_check
      _
    $region23: #{tpu_custom_call.1} parent=1 // pred_check_branch
      %57 = sbr.rel (0) target = $region25
    $region24: #{tpu_custom_call.1} parent=1 // pred_region
      %59 = dma.done [#allocation6], 32
    $region25: #{tpu_custom_call.1} parent=1 // pred_fallthru
      _
    %v60 = vld [vmem:[#allocation2] sm:$0xff]
    %v61 = vld [vmem:[#allocation2 + $0x8] sm:$0xff]
    %v62 = vld [vmem:[#allocation5] sm:$0xff]
    %v63 = vld [vmem:[#allocation5 + $0x8] sm:$0xff]
    %v64 = vld [vmem:[#allocation5 + $0x10] sm:$0xff]
    %v65 = vld [vmem:[#allocation5 + $0x18] sm:$0xff]
    %v66 = vld [vmem:[#allocation7] sm:$0x3]
    %v68 = vperm.slane %v66, 0
    %v69 = vperm.slane %v66, 1
    %vm72 = vcmask 130048
    %v74 = vsel %vm72, %v60, 0
    %v77 = vsel %vm72, %v61, 0
    %79 = vmatpush.msra.mxu0 0.0
    %80 = vmatpush.msra.mxu0 0.0
    %81 = vmatpush.msra.mxu0 0.0
    %82 = vmatpush.msra.mxu0 0.0
    %83 = vmatpush.msra.mxu0 0.0
    %84 = vmatpush.msra.mxu0 0.0
    %85 = vmatpush.msra.mxu0 0.0
    %86 = vmatpush.msra.mxu0 0.0
    %87 = vmatpush.msra.mxu0 0.0
    %88 = vmatpush.msra.mxu0 0.0
    %89 = vmatpush.msra.mxu0 0.0
    %90 = vmatpush.msra.mxu0 0.0
    %91 = vmatpush.msra.mxu0 0.0
    %92 = vmatpush.msra.mxu0 0.0
    %93 = vmatpush.msra.mxu0 %v64
    %94 = vmatpush.msra.mxu0 %v62
    %95 = vmatmul.f32.gmra.mxu0 %v74
    %v96 = vpop.f32.mrf.mxu0
    %v97 = vadd.f32 %v68, %v96
    %98 = vmatmul.f32.gmra.mxu0 %v77
    %v99 = vpop.f32.mrf.mxu0
    %v100 = vadd.f32 %v68, %v99
    %101 = vdwg.mxu0
    %102 = vmatpush.msra.mxu0 0.0
    %103 = vmatpush.msra.mxu0 0.0
    %104 = vmatpush.msra.mxu0 0.0
    %105 = vmatpush.msra.mxu0 0.0
    %106 = vmatpush.msra.mxu0 0.0
    %107 = vmatpush.msra.mxu0 0.0
    %108 = vmatpush.msra.mxu0 0.0
    %109 = vmatpush.msra.mxu0 0.0
    %110 = vmatpush.msra.mxu0 0.0
    %111 = vmatpush.msra.mxu0 0.0
    %112 = vmatpush.msra.mxu0 0.0
    %113 = vmatpush.msra.mxu0 0.0
    %114 = vmatpush.msra.mxu0 0.0
    %115 = vmatpush.msra.mxu0 0.0
    %116 = vmatpush.msra.mxu0 %v65
    %117 = vmatpush.msra.mxu0 %v63
    %118 = vmatmul.f32.gmra.mxu0 %v74
    %v119 = vpop.f32.mrf.mxu0
    %v120 = vadd.f32 %v69, %v119
    %121 = vmatmul.f32.gmra.mxu0 %v77
    %v122 = vpop.f32.mrf.mxu0
    %v123 = vadd.f32 %v69, %v122
    %124 = vdwg.mxu0
    %125 = vst [vmem:[#allocation8] sm:$0xff] %v97
    %126 = vst [vmem:[#allocation8 + $0x8] sm:$0xff] %v120
    %127 = vst [vmem:[#allocation8 + $0x10] sm:$0xff] %v100
    %128 = vst [vmem:[#allocation8 + $0x18] sm:$0xff] %v123
    // Predicated region
    $region26: #{tpu_custom_call.1} parent=1 // pred_check
      _
    $region27: #{tpu_custom_call.1} parent=1 // pred_check_branch
      %130 = sbr.rel (0) target = $region29
    $region28: #{tpu_custom_call.1} parent=1 // pred_region
      %132 = vsyncadd [#allocation4], 0
      %s133 = sshll.u32 [#allocation8], 4
      %s134 = int_to_ptr.vmem [resolvable:$true] %s133
      %s135 = sshll.u32 %s3, 4
      %s136 = int_to_ptr.hbm [resolvable:$true] %s135
      %141 = dma.vmem_to_hbm [thread:$0]  %s134, 512, %s136, [#allocation4], 256, 256, 16
    $region29: #{tpu_custom_call.1} parent=1 // pred_fallthru
      _
    // Predicated region
    $region30: #{tpu_custom_call.1} parent=1 // pred_check
      _
    $region31: #{tpu_custom_call.1} parent=1 // pred_check_branch
      %143 = sbr.rel (0) target = $region33
    $region32: #{tpu_custom_call.1} parent=1 // pred_region
      %145 = dma.done [#allocation4], 512
    $region33: #{tpu_custom_call.1} parent=1 // pred_fallthru
      _
    %146 = vsyncpa [#allocation3], 1
    %147 = vsyncpa [#allocation6], 1
    %148 = vsyncpa [#allocation4], 1

</llo_original>
